<compile_context>
chip_gen: v5e
topology: v5e:2x2
jax: 0.10.0
libtpu: 0.0.40
codegen_flags: <defaults>
</compile_context>

<pallas_src>
import numpy as np
import jax
import jax.numpy as jnp
from jax.experimental import pallas as pl
from jax.experimental.pallas import tpu as pltpu

_LANE = 128


def _ceil_to(n, m):
    return ((n + m - 1) // m) * m


def _vmem():
    # Whole-array blocks resident in VMEM (total working set ~100 KB).
    return pl.BlockSpec(memory_space=pltpu.MemorySpace.VMEM)


# ---------------------------------------------------------------------------
# Fused kernel: [all LSTM layers + output Linear] in one pallas_call
# ---------------------------------------------------------------------------
def _make_fused_kernel(meta):
    H = meta['H']
    num_layers = meta['num_layers']
    layer_off = meta['layer_off']      # static row offset of each layer block
    head_off = meta['head_off']
    x0_k = meta['x0_cols']             # layer-0 contraction size (padded)

    def kernel(x_ref, p_ref, o_ref):
        def lstm_cell(gates):
            # fused gate columns: [ i | g | o | pad ]; c0 = 0 => c = i*g
            i = jax.nn.sigmoid(gates[:, 0:H])
            g = jnp.tanh(gates[:, H:2 * H])
            o = jax.nn.sigmoid(gates[:, 2 * H:3 * H])
            return o * jnp.tanh(i * g)

        # ---- layer 0: ONE fused dot; bias folded via the constant-1 column
        #      of x0 (no separate VPU bias add). ----
        w0 = p_ref[pl.ds(layer_off[0], x0_k), :]
        h = lstm_cell(jnp.dot(x_ref[...], w0,
                              preferred_element_type=jnp.float32))

        # ---- layers 1..L-1: one fused dot + one broadcast bias add each;
        #      h never leaves VMEM/vregs. ----
        for l in range(1, num_layers):
            off = layer_off[l]
            w = p_ref[pl.ds(off, H), :]
            b = p_ref[pl.ds(off + H, 1), :]
            h = lstm_cell(jnp.dot(h, w, preferred_element_type=jnp.float32)
                          + b)

        # ---- output Linear (lane-dense padded width) ----
        wh = p_ref[pl.ds(head_off, H), :]
        bh = p_ref[pl.ds(head_off + H, 1), :]
        o_ref[...] = (jnp.dot(h, wh, preferred_element_type=jnp.float32)
                      + bh).astype(o_ref.dtype)

    return kernel


# ---------------------------------------------------------------------------
# One-time parameter preparation: ONE flat kernel-ready operand + static meta
# ---------------------------------------------------------------------------
def prep_params(raw, input_channels, pred_size, window_size, rnn_window,
                forecast=1):
    H = int(raw['lstm'][0]['w_hh'].shape[1])
    num_layers = len(raw['lstm'])
    d0 = input_channels * window_size + pred_size * rnn_window
    out_f = int(raw['dnn_w'].shape[0])             # pred_size*forecast (Point)
    GW = _ceil_to(max(3 * H, out_f), _LANE)        # lane-dense fused width

    blocks, layer_off, row_off = [], [], 0
    for l, p in enumerate(raw['lstm']):
        in_l = d0 if l == 0 else H
        b = p['b_ih'] + p['b_hh']                  # fold both biases

        W = jnp.zeros((in_l, GW), jnp.float32)
        bias = jnp.zeros((1, GW), jnp.float32)
        # PyTorch gate rows: i=0, f=1 (dead, c0=0), g=2, o=3
        for col, gate in enumerate((0, 2, 3)):
            W = W.at[:, col * H:(col + 1) * H].set(
                p['w_ih'][gate * H:(gate + 1) * H].T)
            bias = bias.at[0, col * H:(col + 1) * H].set(
                b[gate * H:(gate + 1) * H])

        rows = _ceil_to((d0 if l == 0 else H) + 1, 8)   # sublane-aligned block
        blk = jnp.zeros((rows, GW), jnp.float32)
        blk = blk.at[:in_l].set(W).at[in_l:in_l + 1].set(bias)
        layer_off.append(row_off)
        blocks.append(blk)
        row_off += rows

    head_rows = _ceil_to(H + 1, 8)
    head = jnp.zeros((head_rows, GW), jnp.float32)
    head = head.at[:H, :out_f].set(raw['dnn_w'].T)
    head = head.at[H, :out_f].set(raw['dnn_b'])
    head_off = row_off
    blocks.append(head)

    params = jnp.concatenate(blocks, axis=0)       # ONE flat [rows, GW] operand
    meta = dict(H=H, GW=GW, d0=d0, num_layers=num_layers,
                layer_off=layer_off, head_off=head_off, out_f=out_f,
                x0_cols=_ceil_to(d0 + 1, 8),
                pred_size=pred_size, forecast=forecast)
    return params, meta


# ---------------------------------------------------------------------------
# Forward wrapper
# ---------------------------------------------------------------------------
def ar_rnn_forward(params, meta, inp, x_rec):
    """Equivalent of AR_RNN.forward (Point prediction, fresh hidden state)."""
    B = inp.shape[0]
    d0, x0_cols, GW = meta['d0'], meta['x0_cols'], meta['GW']

    # [flatten(inp) | flatten(x_rec) | 1 | 0-pad] -> the constant-1 column
    # folds the layer-0 bias into its matmul.
    x0 = jnp.concatenate(
        [inp.reshape(B, -1), x_rec.reshape(B, -1),
         jnp.ones((B, 1), jnp.float32),
         jnp.zeros((B, x0_cols - d0 - 1), jnp.float32)], axis=1)

    rows = params.shape[0]
    flops = 2 * B * GW * (x0_cols + meta['H'] * meta['num_layers'])
    transcendentals = 4 * B * meta['H'] * meta['num_layers']
    bytes_accessed = 4 * (B * x0_cols + rows * GW + B * GW)

    out = pl.pallas_call(
        _make_fused_kernel(meta),
        out_shape=jax.ShapeDtypeStruct((B, GW), jnp.float32),
        in_specs=[_vmem(), _vmem()],
        out_specs=_vmem(),
        compiler_params=pltpu.CompilerParams(vmem_limit_bytes=4 << 20),
        cost_estimate=pl.CostEstimate(flops=flops,
                                      transcendentals=transcendentals,
                                      bytes_accessed=bytes_accessed),
    )(x0, params)

    return out[:, :meta['out_f']].reshape(-1, meta['pred_size'],
                                          meta['forecast'])


# ---------------------------------------------------------------------------
# Deterministic parameter initialisation (PyTorch-layout, AR_RNN.__init__)
# ---------------------------------------------------------------------------
def init_ar_rnn_params(key, input_channels, pred_size, window_size, rnn_window,
                       blocks, num_layers, forecast=1):
    input_size = window_size * input_channels + rnn_window * pred_size
    H = blocks
    k = 1.0 / float(np.sqrt(H))
    params = {'lstm': []}
    for layer in range(num_layers):
        in_sz = input_size if layer == 0 else H
        key, k0, k1, k2, k3 = jax.random.split(key, 5)
        params['lstm'].append(dict(
            w_ih=jax.random.uniform(k0, (4 * H, in_sz), jnp.float32, -k, k),
            w_hh=jax.random.uniform(k1, (4 * H, H), jnp.float32, -k, k),
            b_ih=jax.random.uniform(k2, (4 * H,), jnp.float32, -k, k),
            b_hh=jax.random.uniform(k3, (4 * H,), jnp.float32, -k, k),
        ))
    out_features = pred_size * forecast * 1     # Pred_Type='Point' -> preds=1
    kd = 1.0 / float(np.sqrt(blocks))
    key, k4, k5 = jax.random.split(key, 3)
    params['dnn_w'] = jax.random.uniform(k4, (out_features, blocks),
                                         jnp.float32, -kd, kd)
    params['dnn_b'] = jax.random.uniform(k5, (out_features,),
                                         jnp.float32, -kd, kd)
    return params


# Pure-JAX reference (correctness check only)
def _reference(params, inp, x_rec, pred_size, forecast=1):
    B = inp.shape[0]
    x = jnp.concatenate([inp.reshape(B, -1), x_rec.reshape(B, -1)], axis=1)
    layer_in = x
    for p in params['lstm']:
        H = p['w_hh'].shape[1]
        gates = layer_in @ p['w_ih'].T + p['b_ih'] + p['b_hh']
        i = jax.nn.sigmoid(gates[:, :H])
        g = jnp.tanh(gates[:, 2 * H:3 * H])
        o = jax.nn.sigmoid(gates[:, 3 * H:])
        c = i * g                           # c0 = 0 -> forget term vanishes
        layer_in = o * jnp.tanh(c)
    out = layer_in @ params['dnn_w'].T + params['dnn_b']
    return out.reshape(-1, pred_size, forecast)


if __name__ == "__main__":
    # AR_RNN(input_channels=4, pred_size=2, window_size=16, rnn_window=8,
    #        blocks=32, num_layers=2, blocktype='LSTM')
    B = 16
    input_channels, pred_size = 4, 2
    window_size, rnn_window = 16, 8
    blocks, num_layers, forecast = 32, 2, 1

    key = jax.random.PRNGKey(0)
    key, ki, kr, kp = jax.random.split(key, 4)
    inp = jax.random.normal(ki, (B, input_channels, window_size), jnp.float32)
    x_rec = jax.random.normal(kr, (B, pred_size, rnn_window), jnp.float32)
    raw = init_ar_rnn_params(kp, input_channels, pred_size, window_size,
                             rnn_window, blocks, num_layers, forecast)
    params, meta = prep_params(raw, input_channels, pred_size, window_size,
                               rnn_window, forecast)          # once, not per step

    fwd = jax.jit(lambda p, a, b: ar_rnn_forward(p, meta, a, b))
    out = jax.block_until_ready(fwd(params, inp, x_rec))

    assert out.shape == (B, pred_size, forecast), out.shape
    ref = _reference(raw, inp, x_rec, pred_size, forecast)
    assert jnp.allclose(out, ref, atol=1e-5, rtol=1e-5), \
        float(jnp.max(jnp.abs(out - ref)))
    print("KERNEL_OK")
</pallas_src>

<mosaic_0001>
module attributes {stable_mosaic.version = 11 : i64} {
  func.func @kernel(%arg0: memref<16x88xf32, #tpu.memory_space<vmem>>, %arg1: memref<168x128xf32, #tpu.memory_space<vmem>>, %arg2: memref<16x128xf32, #tpu.memory_space<vmem>>) attributes {dimension_semantics = [], scalar_prefetch = 0 : i64, scratch_operands = 0 : i64, tpu.core_type = #tpu.core_type<tc>} {
    %c0 = arith.constant 0 : index
    %c0_0 = arith.constant 0 : index
    %0 = vector.load %arg1[%c0, %c0_0] : memref<168x128xf32, #tpu.memory_space<vmem>>, vector<88x128xf32>
    %c0_1 = arith.constant 0 : index
    %c0_2 = arith.constant 0 : index
    %1 = vector.load %arg0[%c0_1, %c0_2] : memref<16x88xf32, #tpu.memory_space<vmem>>, vector<16x88xf32>
    %cst = arith.constant dense<0.000000e+00> : vector<16x128xf32>
    %2 = tpu.matmul %1, %0, %cst {dimension_numbers = #tpu.dot_dimension_numbers<[1], [0], [0], [1], [0, 0, 1, 1], [], []>} : vector<16x88xf32>, vector<88x128xf32>, vector<16x128xf32> -> vector<16x128xf32>
    %3 = vector.extract_strided_slice %2 {offsets = [0, 0], sizes = [16, 32], strides = [1, 1]} : vector<16x128xf32> to vector<16x32xf32>
    %4 = arith.negf %3 : vector<16x32xf32>
    %5 = math.exp %4 : vector<16x32xf32>
    %cst_3 = arith.constant 1.000000e+00 : f32
    %6 = vector.broadcast %cst_3 : f32 to vector<16x32xf32>
    %7 = arith.addf %6, %5 : vector<16x32xf32>
    %8 = arith.divf %6, %7 : vector<16x32xf32>
    %9 = vector.extract_strided_slice %2 {offsets = [0, 32], sizes = [16, 32], strides = [1, 1]} : vector<16x128xf32> to vector<16x32xf32>
    %10 = math.tanh %9 : vector<16x32xf32>
    %11 = vector.extract_strided_slice %2 {offsets = [0, 64], sizes = [16, 32], strides = [1, 1]} : vector<16x128xf32> to vector<16x32xf32>
    %12 = arith.negf %11 : vector<16x32xf32>
    %13 = math.exp %12 : vector<16x32xf32>
    %cst_4 = arith.constant 1.000000e+00 : f32
    %14 = vector.broadcast %cst_4 : f32 to vector<16x32xf32>
    %15 = arith.addf %14, %13 : vector<16x32xf32>
    %16 = arith.divf %14, %15 : vector<16x32xf32>
    %17 = arith.mulf %8, %10 : vector<16x32xf32>
    %18 = math.tanh %17 : vector<16x32xf32>
    %19 = arith.mulf %16, %18 : vector<16x32xf32>
    %c88 = arith.constant 88 : index
    %c0_5 = arith.constant 0 : index
    %20 = vector.load %arg1[%c88, %c0_5] : memref<168x128xf32, #tpu.memory_space<vmem>>, vector<32x128xf32>
    %c120 = arith.constant 120 : index
    %c0_6 = arith.constant 0 : index
    %21 = vector.load %arg1[%c120, %c0_6] : memref<168x128xf32, #tpu.memory_space<vmem>>, vector<1x128xf32>
    %cst_7 = arith.constant dense<0.000000e+00> : vector<16x128xf32>
    %22 = tpu.matmul %19, %20, %cst_7 {dimension_numbers = #tpu.dot_dimension_numbers<[1], [0], [0], [1], [0, 0, 1, 1], [], []>} : vector<16x32xf32>, vector<32x128xf32>, vector<16x128xf32> -> vector<16x128xf32>
    %23 = vector.broadcast %21 : vector<1x128xf32> to vector<16x128xf32>
    %24 = arith.addf %22, %23 : vector<16x128xf32>
    %25 = vector.extract_strided_slice %24 {offsets = [0, 0], sizes = [16, 32], strides = [1, 1]} : vector<16x128xf32> to vector<16x32xf32>
    %26 = arith.negf %25 : vector<16x32xf32>
    %27 = math.exp %26 : vector<16x32xf32>
    %cst_8 = arith.constant 1.000000e+00 : f32
    %28 = vector.broadcast %cst_8 : f32 to vector<16x32xf32>
    %29 = arith.addf %28, %27 : vector<16x32xf32>
    %30 = arith.divf %28, %29 : vector<16x32xf32>
    %31 = vector.extract_strided_slice %24 {offsets = [0, 32], sizes = [16, 32], strides = [1, 1]} : vector<16x128xf32> to vector<16x32xf32>
    %32 = math.tanh %31 : vector<16x32xf32>
    %33 = vector.extract_strided_slice %24 {offsets = [0, 64], sizes = [16, 32], strides = [1, 1]} : vector<16x128xf32> to vector<16x32xf32>
    %34 = arith.negf %33 : vector<16x32xf32>
    %35 = math.exp %34 : vector<16x32xf32>
    %cst_9 = arith.constant 1.000000e+00 : f32
    %36 = vector.broadcast %cst_9 : f32 to vector<16x32xf32>
    %37 = arith.addf %36, %35 : vector<16x32xf32>
    %38 = arith.divf %36, %37 : vector<16x32xf32>
    %39 = arith.mulf %30, %32 : vector<16x32xf32>
    %40 = math.tanh %39 : vector<16x32xf32>
    %41 = arith.mulf %38, %40 : vector<16x32xf32>
    %c128 = arith.constant 128 : index
    %c0_10 = arith.constant 0 : index
    %42 = vector.load %arg1[%c128, %c0_10] : memref<168x128xf32, #tpu.memory_space<vmem>>, vector<32x128xf32>
    %c160 = arith.constant 160 : index
    %c0_11 = arith.constant 0 : index
    %43 = vector.load %arg1[%c160, %c0_11] : memref<168x128xf32, #tpu.memory_space<vmem>>, vector<1x128xf32>
    %cst_12 = arith.constant dense<0.000000e+00> : vector<16x128xf32>
    %44 = tpu.matmul %41, %42, %cst_12 {dimension_numbers = #tpu.dot_dimension_numbers<[1], [0], [0], [1], [0, 0, 1, 1], [], []>} : vector<16x32xf32>, vector<32x128xf32>, vector<16x128xf32> -> vector<16x128xf32>
    %45 = vector.broadcast %43 : vector<1x128xf32> to vector<16x128xf32>
    %46 = arith.addf %44, %45 : vector<16x128xf32>
    %c0_13 = arith.constant 0 : index
    %c0_14 = arith.constant 0 : index
    %47 = vector.load %arg2[%c0_13, %c0_14] : memref<16x128xf32, #tpu.memory_space<vmem>>, vector<16x128xf32>
    tpu.vector_store %arg2[%c0_13, %c0_14], %46 {strides = array<i32>} : memref<16x128xf32, #tpu.memory_space<vmem>>, vector<16x128xf32>,
    return
  }
}

</mosaic_0001>

<llo_original>
// kernel: _lambda_.1
$region0: #{_lambda_.1}
  #allocation0 [shape = 'u32[]', space=smem, size = 0x4, offset = 0x4, fixed_abs, tag = 'smem constant byte address 0x4 - core index']
  #allocation1 [shape = 'u32[72,128]{1,0:T(1,128)}', space=vmem, size = 0x9000, scoped, tag = 'internal scratch']
  %s0 = inlined_call_operand.vmem [shape: f32[16,88], index: 0, kind: input, shape index: {}]
  %s1 = inlined_call_operand.vmem [shape: f32[168,128], index: 1, kind: input, shape index: {}]
  %s2 = inlined_call_operand.vmem [shape: f32[16,128], index: 2, kind: output, shape index: {}]
  %s3 = sld [smem:[#allocation0]]
  $region18: #{_lambda_.1} parent=0
    _
  %s5 = ssub.s32 1, %s3
  %s6 = scalar_select 0, %s5, %s3
  // Predicated region
  $region2: #{_lambda_.1} parent=0 // pred_check
    _
  $region3: #{_lambda_.1} parent=0 // pred_check_branch
    %8 = sbr.rel (0) target = $region5
  $region4: #{_lambda_.1} parent=0 // pred_region
    _
  $region5: #{_lambda_.1} parent=0 // pred_fallthru
    _
  // Predicated region
  $region6: #{_lambda_.1} parent=0 // pred_check
    _
  $region7: #{_lambda_.1} parent=0 // pred_check_branch
    %10 = sbr.rel (0) target = $region9
  $region8: #{_lambda_.1} parent=0 // pred_region
    _
  $region9: #{_lambda_.1} parent=0 // pred_fallthru
    _
  %v11 = vld [vmem:[%s1] sm:$0xff]
  %v12 = vld [vmem:[%s1 + $0x8] sm:$0xff]
  %v13 = vld [vmem:[%s1 + $0x10] sm:$0xff]
  %v14 = vld [vmem:[%s1 + $0x18] sm:$0xff]
  %v15 = vld [vmem:[%s1 + $0x20] sm:$0xff]
  %v16 = vld [vmem:[%s1 + $0x28] sm:$0xff]
  %v17 = vld [vmem:[%s1 + $0x30] sm:$0xff]
  %v18 = vld [vmem:[%s1 + $0x38] sm:$0xff]
  %v19 = vld [vmem:[%s1 + $0x40] sm:$0xff]
  %v20 = vld [vmem:[%s1 + $0x48] sm:$0xff]
  %v21 = vld [vmem:[%s1 + $0x50] sm:$0xff]
  %v22 = vld [vmem:[%s0] sm:$0xff]
  %v23 = vld [vmem:[%s0 + $0x8] sm:$0xff]
  %vm24 = vcmask 719872
  %v26 = vsel %vm24, %v22, 0
  %v29 = vsel %vm24, %v23, 0
  %31 = vmatpush.msra.mxu0 0.0
  %32 = vmatpush.msra.mxu0 0.0
  %33 = vmatpush.msra.mxu0 0.0
  %34 = vmatpush.msra.mxu0 0.0
  %35 = vmatpush.msra.mxu0 0.0
  %36 = vmatpush.msra.mxu0 %v21
  %37 = vmatpush.msra.mxu0 %v20
  %38 = vmatpush.msra.mxu0 %v19
  %39 = vmatpush.msra.mxu0 %v18
  %40 = vmatpush.msra.mxu0 %v17
  %41 = vmatpush.msra.mxu0 %v16
  %42 = vmatpush.msra.mxu0 %v15
  %43 = vmatpush.msra.mxu0 %v14
  %44 = vmatpush.msra.mxu0 %v13
  %45 = vmatpush.msra.mxu0 %v12
  %46 = vmatpush.msra.mxu0 %v11
  %47 = vmatmul.f32.gmra.mxu0 %v26
  %v48 = vpop.f32.mrf.mxu0
  %v49 = vadd.f32 0.0, %v48
  %50 = vmatmul.f32.gmra.mxu0 %v29
  %v51 = vpop.f32.mrf.mxu0
  %v52 = vadd.f32 0.0, %v51
  %53 = vdwg.mxu0
  %v54 = vxor.u32 %v49, 2147483648
  %v55 = vxor.u32 %v52, 2147483648
  %v56 = vmul.f32 %v54, 1.442695
  %v57 = vpow.pop %v56
  %v58 = vmul.f32 %v55, 1.442695
  %v59 = vpow.pop %v58
  %v60 = vadd.f32 %v57, 1.0
  %v61 = vadd.f32 %v59, 1.0
  %v62 = vrcp.pop %v60
  %v63 = vmul.f32 %v60, %v62
  %v64 = vsub.f32 1.0, %v63
  %v65 = vmul.f32 %v62, %v64
  %v66 = vadd.f32 %v62, %v65
  %vm67 = vweird.f32 %v60
  %vm68 = vweird.f32 %v62
  %vm69 = vmor %vm67, %vm68
  %v70 = vsel %vm69, %v62, %v66
  %v71 = vand.u32 2147483647, %v60
  %vm72 = vcmp.eq.f32.partialorder %v71, 8.507059e+37
  %v73 = vand.u32 %v60, 2147483648
  %v74 = vor.u32 1.1754944e-38, %v73
  %v75 = vsel %vm72, %v74, %v70
  %v76 = vmul.f32 1.0, %v75
  %v77 = vrcp.pop %v61
  %v78 = vmul.f32 %v61, %v77
  %v79 = vsub.f32 1.0, %v78
  %v80 = vmul.f32 %v77, %v79
  %v81 = vadd.f32 %v77, %v80
  %vm82 = vweird.f32 %v61
  %vm83 = vweird.f32 %v77
  %vm84 = vmor %vm82, %vm83
  %v85 = vsel %vm84, %v77, %v81
  %v86 = vand.u32 2147483647, %v61
  %vm87 = vcmp.eq.f32.partialorder %v86, 8.507059e+37
  %v88 = vand.u32 %v61, 2147483648
  %v89 = vor.u32 1.1754944e-38, %v88
  %v90 = vsel %vm87, %v89, %v85
  %v91 = vmul.f32 1.0, %v90
  %v92 = vtanh.pop %v49
  %v93 = vtanh.pop %v52
  %96 = vrot.lane.b32.xlu0 %v92, 96
  %v97 = vpop.permute.xlu0 %96
  %98 = vrot.lane.b32.xlu0 %v93, 96
  %v99 = vpop.permute.xlu0 %98
  %v102 = vmul.f32 %v76, %v97
  %v103 = vmul.f32 %v91, %v99
  %v104 = vtanh.pop %v102
  %v105 = vtanh.pop %v103
  %108 = vrot.lane.b32.xlu0 %v104, 64
  %v109 = vpop.permute.xlu0 %108
  %110 = vrot.lane.b32.xlu0 %v105, 64
  %v111 = vpop.permute.xlu0 %110
  %v114 = vmul.f32 %v76, %v109
  %v115 = vmul.f32 %v91, %v111
  %v116 = vld [vmem:[%s1 + $0x58] sm:$0xff]
  %v117 = vld [vmem:[%s1 + $0x60] sm:$0xff]
  %v118 = vld [vmem:[%s1 + $0x68] sm:$0xff]
  %v119 = vld [vmem:[%s1 + $0x70] sm:$0xff]
  %v120 = vld [vmem:[%s1 + $0x78] sm:$0x1]
  %v121 = vperm.slane %v120, 0
  %124 = vrot.lane.b32.xlu0 %v114, 64
  %v125 = vpop.permute.xlu0 %124
  %126 = vrot.lane.b32.xlu0 %v115, 64
  %v127 = vpop.permute.xlu0 %126
  %vm128 = vcmask 261120
  %v129 = vsel %vm128, %v125, 0
  %v131 = vsel %vm128, %v127, 0
  %133 = vmatpush.msra.mxu0 0.0
  %134 = vmatpush.msra.mxu0 0.0
  %135 = vmatpush.msra.mxu0 0.0
  %136 = vmatpush.msra.mxu0 0.0
  %137 = vmatpush.msra.mxu0 0.0
  %138 = vmatpush.msra.mxu0 0.0
  %139 = vmatpush.msra.mxu0 0.0
  %140 = vmatpush.msra.mxu0 0.0
  %141 = vmatpush.msra.mxu0 0.0
  %142 = vmatpush.msra.mxu0 0.0
  %143 = vmatpush.msra.mxu0 0.0
  %144 = vmatpush.msra.mxu0 0.0
  %145 = vmatpush.msra.mxu0 %v119
  %146 = vmatpush.msra.mxu0 %v118
  %147 = vmatpush.msra.mxu0 %v117
  %148 = vmatpush.msra.mxu0 %v116
  %149 = vmatmul.f32.gmra.mxu0 %v129
  %v150 = vpop.f32.mrf.mxu0
  %v151 = vadd.f32 %v121, %v150
  %152 = vmatmul.f32.gmra.mxu0 %v131
  %v153 = vpop.f32.mrf.mxu0
  %v154 = vadd.f32 %v121, %v153
  %155 = vdwg.mxu0
  %v156 = vxor.u32 %v151, 2147483648
  %v157 = vxor.u32 %v154, 2147483648
  %v158 = vmul.f32 %v156, 1.442695
  %v159 = vpow.pop %v158
  %v160 = vmul.f32 %v157, 1.442695
  %v161 = vpow.pop %v160
  %v162 = vadd.f32 %v159, 1.0
  %v163 = vadd.f32 %v161, 1.0
  %v164 = vrcp.pop %v162
  %v165 = vmul.f32 %v162, %v164
  %v166 = vsub.f32 1.0, %v165
  %v167 = vmul.f32 %v164, %v166
  %v168 = vadd.f32 %v164, %v167
  %vm169 = vweird.f32 %v162
  %vm170 = vweird.f32 %v164
  %vm171 = vmor %vm169, %vm170
  %v172 = vsel %vm171, %v164, %v168
  %v173 = vand.u32 2147483647, %v162
  %vm174 = vcmp.eq.f32.partialorder %v173, 8.507059e+37
  %v175 = vand.u32 %v162, 2147483648
  %v176 = vor.u32 1.1754944e-38, %v175
  %v177 = vsel %vm174, %v176, %v172
  %v178 = vmul.f32 1.0, %v177
  %v179 = vrcp.pop %v163
  %v180 = vmul.f32 %v163, %v179
  %v181 = vsub.f32 1.0, %v180
  %v182 = vmul.f32 %v179, %v181
  %v183 = vadd.f32 %v179, %v182
  %vm184 = vweird.f32 %v163
  %vm185 = vweird.f32 %v179
  %vm186 = vmor %vm184, %vm185
  %v187 = vsel %vm186, %v179, %v183
  %v188 = vand.u32 2147483647, %v163
  %vm189 = vcmp.eq.f32.partialorder %v188, 8.507059e+37
  %v190 = vand.u32 %v163, 2147483648
  %v191 = vor.u32 1.1754944e-38, %v190
  %v192 = vsel %vm189, %v191, %v187
  %v193 = vmul.f32 1.0, %v192
  %v194 = vtanh.pop %v151
  %v195 = vtanh.pop %v154
  %198 = vrot.lane.b32.xlu0 %v194, 96
  %v199 = vpop.permute.xlu0 %198
  %200 = vrot.lane.b32.xlu0 %v195, 96
  %v201 = vpop.permute.xlu0 %200
  %v204 = vmul.f32 %v178, %v199
  %v205 = vmul.f32 %v193, %v201
  %v206 = vtanh.pop %v204
  %v207 = vtanh.pop %v205
  %210 = vrot.lane.b32.xlu0 %v206, 64
  %v211 = vpop.permute.xlu0 %210
  %212 = vrot.lane.b32.xlu0 %v207, 64
  %v213 = vpop.permute.xlu0 %212
  %v216 = vmul.f32 %v178, %v211
  %v217 = vmul.f32 %v193, %v213
  %v218 = vld [vmem:[%s1 + $0x80] sm:$0xff]
  %v219 = vld [vmem:[%s1 + $0x88] sm:$0xff]
  %v220 = vld [vmem:[%s1 + $0x90] sm:$0xff]
  %v221 = vld [vmem:[%s1 + $0x98] sm:$0xff]
  %v222 = vld [vmem:[%s1 + $0xa0] sm:$0x1]
  %v223 = vperm.slane %v222, 0
  %226 = vrot.lane.b32.xlu0 %v216, 64
  %v227 = vpop.permute.xlu0 %226
  %228 = vrot.lane.b32.xlu0 %v217, 64
  %v229 = vpop.permute.xlu0 %228
  %v230 = vsel %vm128, %v227, 0
  %v232 = vsel %vm128, %v229, 0
  %234 = vmatpush.msra.mxu0 0.0
  %235 = vmatpush.msra.mxu0 0.0
  %236 = vmatpush.msra.mxu0 0.0
  %237 = vmatpush.msra.mxu0 0.0
  %238 = vmatpush.msra.mxu0 0.0
  %239 = vmatpush.msra.mxu0 0.0
  %240 = vmatpush.msra.mxu0 0.0
  %241 = vmatpush.msra.mxu0 0.0
  %242 = vmatpush.msra.mxu0 0.0
  %243 = vmatpush.msra.mxu0 0.0
  %244 = vmatpush.msra.mxu0 0.0
  %245 = vmatpush.msra.mxu0 0.0
  %246 = vmatpush.msra.mxu0 %v221
  %247 = vmatpush.msra.mxu0 %v220
  %248 = vmatpush.msra.mxu0 %v219
  %249 = vmatpush.msra.mxu0 %v218
  %250 = vmatmul.f32.gmra.mxu0 %v230
  %v251 = vpop.f32.mrf.mxu0
  %v252 = vadd.f32 %v223, %v251
  %253 = vmatmul.f32.gmra.mxu0 %v232
  %v254 = vpop.f32.mrf.mxu0
  %v255 = vadd.f32 %v223, %v254
  %256 = vdwg.mxu0
  %257 = vst [vmem:[%s2] sm:$0xff] %v252
  %258 = vst [vmem:[%s2 + $0x8] sm:$0xff] %v255
  // Predicated region
  $region10: #{_lambda_.1} parent=0 // pred_check
    _
  $region11: #{_lambda_.1} parent=0 // pred_check_branch
    %260 = sbr.rel (0) target = $region13
  $region12: #{_lambda_.1} parent=0 // pred_region
    _
  $region13: #{_lambda_.1} parent=0 // pred_fallthru
    _
  // Predicated region
  $region14: #{_lambda_.1} parent=0 // pred_check
    _
  $region15: #{_lambda_.1} parent=0 // pred_check_branch
    %262 = sbr.rel (0) target = $region17
  $region16: #{_lambda_.1} parent=0 // pred_region
    _
  $region17: #{_lambda_.1} parent=0 // pred_fallthru
    _

</llo_original>
